<compile_context>
chip_gen: v6e
topology: v6e:2x2x1
jax: 0.10.0
libtpu: 0.0.40
codegen_flags: <defaults>
</compile_context>

<pallas_src>
import jax
import jax.numpy as jnp
from jax import lax
from jax.experimental import pallas as pl
from jax.experimental.pallas import tpu as pltpu

LN_EPS = 1e-5  # PyTorch nn.LayerNorm default


def _v3_activation_kernel(x_ref, g_ref, b_ref, o_ref):
    # x_ref: (tile_rows, H)   g_ref/b_ref: (1, H)   o_ref: (tile_rows, H)
    x = x_ref[...].astype(jnp.float32)
    mean = jnp.mean(x, axis=-1, keepdims=True)
    xc = x - mean
    var = jnp.mean(xc * xc, axis=-1, keepdims=True)
    xn = xc * lax.rsqrt(var + LN_EPS)
    y = xn * g_ref[...].astype(jnp.float32) + b_ref[...].astype(jnp.float32)
    # SiLU = y * sigmoid(y).  Exact sigmoid: the kernel is HBM-bound, so the
    # EUP exp + exact divide are completely hidden under the DMA stream.
    o_ref[...] = (y * jax.nn.sigmoid(y)).astype(o_ref.dtype)


def _round_up(n, m):
    return ((n + m - 1) // m) * m


def _sublane_multiple(dtype):
    # Sub-32-bit dtypes pack along sublanes: f32 -> 8, bf16 -> 16, int8/fp8 -> 32.
    itemsize = jnp.dtype(dtype).itemsize
    return max(8, 32 // max(1, itemsize))


def _vmem_capacity_bytes():
    try:
        return int(pltpu.get_tpu_info().vmem_capacity_bytes)
    except Exception:
        return 64 << 20  # conservative fallback (v7x per-TC VMEM)


def v3_activation(x, gamma, beta, *, tile_rows=None):
    """x: (..., H); gamma, beta: (H,). Returns SiLU(LayerNorm(x)) with same shape/dtype."""
    orig_shape = x.shape
    H = orig_shape[-1]
    rows = 1
    for d in orig_shape[:-1]:
        rows *= d
    x2 = x.reshape(rows, H)  # contiguous reshape: no extra HBM pass

    itemsize = jnp.dtype(x.dtype).itemsize
    sub = _sublane_multiple(x.dtype)

    # ---- Generation-aware VMEM budgeting -----------------------------------
    vmem_cap = _vmem_capacity_bytes()
    if vmem_cap >= (100 << 20):        # v5e / v6e: 128 MiB per TC
        usable = 80 << 20
        vmem_limit_cap = 96 << 20
    else:                              # v7x: 64 MiB per TC
        usable = 40 << 20
        vmem_limit_cap = 48 << 20

    # Per-row VMEM cost of a tile:
    #   I/O double buffers: 2*(in + out) = 4 * H * itemsize
    #   f32 intermediates the compiler materializes (x, centered, y, sigmoid):
    #   ~3 * H * 4 bytes.
    bytes_per_row_total = max(1, H * (4 * itemsize + 12))

    if tile_rows is None:
        tile_rows = usable // bytes_per_row_total
        tile_rows = max(sub, (tile_rows // sub) * sub)
        # Don't make the block bigger than the (padded) input.
        tile_rows = min(tile_rows, _round_up(rows, sub))
    tile_rows = max(sub, (tile_rows // sub) * sub)

    g2 = gamma.reshape(1, H)
    b2 = beta.reshape(1, H)

    grid = (pl.cdiv(rows, tile_rows),)  # ragged last block handled by Pallas

    # Declared VMEM: I/O double buffers + f32 intermediates + params + headroom.
    tile_bytes = tile_rows * H * itemsize
    interm_bytes = 3 * tile_rows * H * 4
    live_bytes = 2 * 2 * tile_bytes + interm_bytes + 2 * H * 4
    vmem_limit = int(min(max(live_bytes + (4 << 20), 16 << 20), vmem_limit_cap))

    out = pl.pallas_call(
        _v3_activation_kernel,
        out_shape=jax.ShapeDtypeStruct((rows, H), x.dtype),
        grid_spec=pltpu.PrefetchScalarGridSpec(
            num_scalar_prefetch=0,
            grid=grid,
            in_specs=[
                pl.BlockSpec((tile_rows, H), lambda i: (i, 0)),
                pl.BlockSpec((1, H), lambda i: (0, 0)),
                pl.BlockSpec((1, H), lambda i: (0, 0)),
            ],
            out_specs=pl.BlockSpec((tile_rows, H), lambda i: (i, 0)),
        ),
        compiler_params=pltpu.CompilerParams(
            dimension_semantics=("parallel",),
            vmem_limit_bytes=vmem_limit,
        ),
    )(x2, g2, b2)

    return out.reshape(orig_shape)


def _reference(x, gamma, beta):
    xf = x.astype(jnp.float32)
    mean = jnp.mean(xf, axis=-1, keepdims=True)
    var = jnp.mean((xf - mean) ** 2, axis=-1, keepdims=True)
    xn = (xf - mean) / jnp.sqrt(var + LN_EPS)
    y = xn * gamma + beta
    return (y * jax.nn.sigmoid(y)).astype(x.dtype)


if __name__ == "__main__":
    key = jax.random.PRNGKey(0)
    # Small shapes consistent with the module; H=128 keeps the lane axis dense.
    B, S, H = 2, 8, 128  # LayerNorm normalized shape = (H,)

    x = jax.random.normal(key, (B, S, H), dtype=jnp.float32)
    # Deterministic parameters matching nn.LayerNorm defaults:
    gamma = jnp.ones((H,), dtype=jnp.float32)
    beta = jnp.zeros((H,), dtype=jnp.float32)

    out = v3_activation(x, gamma, beta)
    out = jax.block_until_ready(out)

    ref = _reference(x, gamma, beta)
    assert out.shape == x.shape and out.dtype == x.dtype
    # Exact sigmoid now -> tight tolerance.
    assert jnp.allclose(out, ref, atol=1e-5, rtol=1e-5), "mismatch vs reference"

    print("KERNEL_OK")
</pallas_src>

<mosaic_0001>
module attributes {stable_mosaic.version = 11 : i64} {
  func.func @_v3_activation_kernel(%arg0: i32, %arg1: memref<16x128xf32, #tpu.memory_space<vmem>>, %arg2: memref<1x128xf32, #tpu.memory_space<vmem>>, %arg3: memref<1x128xf32, #tpu.memory_space<vmem>>, %arg4: memref<16x128xf32, #tpu.memory_space<vmem>>) attributes {dimension_semantics = [#tpu.dimension_semantics<parallel>], iteration_bounds = array<i64: 1>, scalar_prefetch = 0 : i64, scratch_operands = 0 : i64, tpu.core_type = #tpu.core_type<tc>, window_params = [{transform_indices = @transform_0, window_bounds = array<i64: 16, 128>}, {pipeline_mode = #tpu.pipeline_mode<synchronous>, transform_indices = @transform_1, window_bounds = array<i64: 1, 128>}, {pipeline_mode = #tpu.pipeline_mode<synchronous>, transform_indices = @transform_2, window_bounds = array<i64: 1, 128>}, {transform_indices = @transform_3, window_bounds = array<i64: 16, 128>}]} {
    %c0 = arith.constant 0 : index
    %c0_0 = arith.constant 0 : index
    %0 = vector.load %arg1[%c0, %c0_0] : memref<16x128xf32, #tpu.memory_space<vmem>>, vector<16x128xf32>
    %cst = arith.constant dense<0.000000e+00> : vector<16xf32>
    %1 = vector.multi_reduction <add>, %0, %cst [1] : vector<16x128xf32> to vector<16xf32>
    %2 = vector.shape_cast %1 : vector<16xf32> to vector<16x1xf32>
    %cst_1 = arith.constant 1.280000e+02 : f32
    %3 = vector.broadcast %cst_1 : f32 to vector<16x1xf32>
    %4 = arith.divf %2, %3 : vector<16x1xf32>
    %5 = vector.broadcast %4 : vector<16x1xf32> to vector<16x128xf32>
    %6 = arith.subf %0, %5 : vector<16x128xf32>
    %7 = arith.mulf %6, %6 : vector<16x128xf32>
    %cst_2 = arith.constant dense<0.000000e+00> : vector<16xf32>
    %8 = vector.multi_reduction <add>, %7, %cst_2 [1] : vector<16x128xf32> to vector<16xf32>
    %9 = vector.shape_cast %8 : vector<16xf32> to vector<16x1xf32>
    %cst_3 = arith.constant 1.280000e+02 : f32
    %10 = vector.broadcast %cst_3 : f32 to vector<16x1xf32>
    %11 = arith.divf %9, %10 : vector<16x1xf32>
    %cst_4 = arith.constant 9.99999974E-6 : f32
    %12 = vector.broadcast %cst_4 : f32 to vector<16x1xf32>
    %13 = arith.addf %11, %12 : vector<16x1xf32>
    %14 = math.rsqrt %13 : vector<16x1xf32>
    %15 = vector.broadcast %14 : vector<16x1xf32> to vector<16x128xf32>
    %16 = arith.mulf %6, %15 : vector<16x128xf32>
    %c0_5 = arith.constant 0 : index
    %c0_6 = arith.constant 0 : index
    %17 = vector.load %arg2[%c0_5, %c0_6] : memref<1x128xf32, #tpu.memory_space<vmem>>, vector<1x128xf32>
    %18 = vector.broadcast %17 : vector<1x128xf32> to vector<16x128xf32>
    %19 = arith.mulf %16, %18 : vector<16x128xf32>
    %c0_7 = arith.constant 0 : index
    %c0_8 = arith.constant 0 : index
    %20 = vector.load %arg3[%c0_7, %c0_8] : memref<1x128xf32, #tpu.memory_space<vmem>>, vector<1x128xf32>
    %21 = vector.broadcast %20 : vector<1x128xf32> to vector<16x128xf32>
    %22 = arith.addf %19, %21 : vector<16x128xf32>
    %23 = arith.negf %22 : vector<16x128xf32>
    %24 = math.exp %23 : vector<16x128xf32>
    %cst_9 = arith.constant 1.000000e+00 : f32
    %25 = vector.broadcast %cst_9 : f32 to vector<16x128xf32>
    %26 = arith.addf %25, %24 : vector<16x128xf32>
    %27 = arith.divf %25, %26 : vector<16x128xf32>
    %28 = arith.mulf %22, %27 : vector<16x128xf32>
    %c0_10 = arith.constant 0 : index
    %c0_11 = arith.constant 0 : index
    %29 = vector.load %arg4[%c0_10, %c0_11] : memref<16x128xf32, #tpu.memory_space<vmem>>, vector<16x128xf32>
    tpu.vector_store %arg4[%c0_10, %c0_11], %28 {strides = array<i32>} : memref<16x128xf32, #tpu.memory_space<vmem>>, vector<16x128xf32>,
    return
  }
  func.func @transform_0(%arg0: i32) -> (i32, i32) {
    %c0_i32 = arith.constant 0 : i32
    %c0_i32_0 = arith.constant 0 : i32
    return %arg0, %c0_i32 : i32, i32
  }
  func.func @transform_1(%arg0: i32) -> (i32, i32) {
    %c0_i32 = arith.constant 0 : i32
    %c0_i32_0 = arith.constant 0 : i32
    %c0_i32_1 = arith.constant 0 : i32
    return %c0_i32, %c0_i32_0 : i32, i32
  }
  func.func @transform_2(%arg0: i32) -> (i32, i32) {
    %c0_i32 = arith.constant 0 : i32
    %c0_i32_0 = arith.constant 0 : i32
    %c0_i32_1 = arith.constant 0 : i32
    return %c0_i32, %c0_i32_0 : i32, i32
  }
  func.func @transform_3(%arg0: i32) -> (i32, i32) {
    %c0_i32 = arith.constant 0 : i32
    %c0_i32_0 = arith.constant 0 : i32
    return %arg0, %c0_i32 : i32, i32
  }
}

</mosaic_0001>

<llo_original>
// kernel: tpu_custom_call.1
$region0: #{tpu_custom_call.1}
  #allocation0 [shape = 'u32[]', space=smem, size = 0x4, offset = 0x4, fixed_abs, tag = 'smem constant byte address 0x4 - core index']
  #allocation1 [shape = 'u32[144,128]{1,0:T(1,128)}', space=vmem, size = 0x12000, scoped, tag = 'internal scratch']
  %s0 = inlined_call_operand.hbm [shape: f32[16,128], index: 0, kind: input, shape index: {}]
  %s1 = inlined_call_operand.vmem [shape: f32[1,128], index: 1, kind: input, shape index: {}]
  %s2 = inlined_call_operand.vmem [shape: f32[1,128], index: 2, kind: input, shape index: {}]
  %s3 = inlined_call_operand.hbm [shape: f32[16,128], index: 3, kind: output, shape index: {}]
  %s4 = sld [smem:[#allocation0]]
  $region26: #{tpu_custom_call.1} parent=0
    _
  %s6 = ssub.s32 1, %s4
  %s7 = scalar_select 0, %s6, %s4
  $region1: #{tpu_custom_call.1} parent=0
    #allocation2 [shape = 'u8[8192]{0}', space=vmem, size = 0x2000, scoped, tag = 'input window, operand 0, single buffered']
    #allocation3 [shape = 's32[1]{0}', space=sflag, size = 0x4, scoped, tag = 'scoped memory for tpu_custom_call.1']
    #allocation4 [shape = 's32[1]{0}', space=sflag, size = 0x4, scoped, tag = 'scoped memory for tpu_custom_call.1']
    #allocation5 [shape = 'u8[8192]{0}', space=vmem, size = 0x2000, scoped, tag = 'output window, operand 0, single buffered']
    %8 = vsyncpa [#allocation3], 0
    %9 = vsyncpa [#allocation4], 0
    // Predicated region
    $region2: #{tpu_custom_call.1} parent=1 // pred_check
      _
    $region3: #{tpu_custom_call.1} parent=1 // pred_check_branch
      %11 = sbr.rel (0) target = $region5
    $region4: #{tpu_custom_call.1} parent=1 // pred_region
      %s13 = ssub.s32 256, 256
      %14 = vsyncadd [#allocation3], %s13
      %s15 = sshll.u32 [#allocation2], 4
      %s16 = int_to_ptr.vmem [resolvable:$true] %s15
      %21 = dma.hbm_to_vmem [thread:$0]  %s0, 256, %s16, [#allocation3], 128, 128, 8
    $region5: #{tpu_custom_call.1} parent=1 // pred_fallthru
      _
    // Predicated region
    $region6: #{tpu_custom_call.1} parent=1 // pred_check
      _
    $region7: #{tpu_custom_call.1} parent=1 // pred_check_branch
      %23 = sbr.rel (0) target = $region9
    $region8: #{tpu_custom_call.1} parent=1 // pred_region
      _
    $region9: #{tpu_custom_call.1} parent=1 // pred_fallthru
      _
    // Predicated region
    $region10: #{tpu_custom_call.1} parent=1 // pred_check
      _
    $region11: #{tpu_custom_call.1} parent=1 // pred_check_branch
      %25 = sbr.rel (0) target = $region13
    $region12: #{tpu_custom_call.1} parent=1 // pred_region
      _
    $region13: #{tpu_custom_call.1} parent=1 // pred_fallthru
      _
    // Predicated region
    $region14: #{tpu_custom_call.1} parent=1 // pred_check
      _
    $region15: #{tpu_custom_call.1} parent=1 // pred_check_branch
      %27 = sbr.rel (0) target = $region17
    $region16: #{tpu_custom_call.1} parent=1 // pred_region
      %28 = dma.done [#allocation3], 256
    $region17: #{tpu_custom_call.1} parent=1 // pred_fallthru
      _
    %v29 = vld [vmem:[#allocation2] sm:$0xff]
    %v30 = vld [vmem:[#allocation2 + $0x8] sm:$0xff]
    %31 = vadd.xlane.f32.xlu0 %v29
    %v32 = vpop.xlane.xlu0 %31
    %33 = vadd.xlane.f32.xlu0 %v30
    %v34 = vpop.xlane.xlu0 %33
    %v35 = vrcp.pop 128.0
    %v36 = vmul.f32 %v32, %v35
    %v37 = vmul.f32 %v34, %v35
    %v38 = vsub.f32 %v29, %v36
    %v39 = vsub.f32 %v30, %v37
    %v40 = vmul.f32 %v38, %v38
    %v41 = vmul.f32 %v39, %v39
    %42 = vadd.xlane.f32.xlu0 %v40
    %v43 = vpop.xlane.xlu0 %42
    %44 = vadd.xlane.f32.xlu0 %v41
    %v45 = vpop.xlane.xlu0 %44
    %v46 = vmul.f32 %v43, %v35
    %v47 = vmul.f32 %v45, %v35
    %v48 = vadd.f32 %v46, 1e-05
    %v49 = vadd.f32 %v47, 1e-05
    %v50 = vrsqrt.pop %v48
    %v51 = vrsqrt.pop %v49
    %v52 = vmul.f32 %v38, %v50
    %v53 = vmul.f32 %v39, %v51
    %v54 = vld [vmem:[%s1] sm:$0x1]
    %v56 = vlaneseq
    %v57 = vshrl.u32 %v56, 7
    %v58 = vsub.s32 0, %v57
    %v59 = vrot.slane %v54, %v58
    %v61 = vmul.f32 %v52, %v59
    %v62 = vmul.f32 %v53, %v59
    %v63 = vld [vmem:[%s2] sm:$0x1]
    %v65 = vlaneseq
    %v66 = vshrl.u32 %v65, 7
    %v67 = vsub.s32 0, %v66
    %v68 = vrot.slane %v63, %v67
    %v70 = vadd.f32 %v61, %v68
    %v71 = vadd.f32 %v62, %v68
    %v72 = vxor.u32 %v70, 2147483648
    %v73 = vxor.u32 %v71, 2147483648
    %v74 = vmul.f32 %v72, 1.442695
    %v75 = vpow.pop %v74
    %v76 = vmul.f32 %v73, 1.442695
    %v77 = vpow.pop %v76
    %v78 = vadd.f32 %v75, 1.0
    %v79 = vadd.f32 %v77, 1.0
    %v80 = vrcp.pop %v78
    %v81 = vmul.f32 1.0, %v80
    %v82 = vrcp.pop %v79
    %v83 = vmul.f32 1.0, %v82
    %v84 = vmul.f32 %v70, %v81
    %v85 = vmul.f32 %v71, %v83
    %86 = vst [vmem:[#allocation5] sm:$0xff] %v84
    %87 = vst [vmem:[#allocation5 + $0x8] sm:$0xff] %v85
    // Predicated region
    $region18: #{tpu_custom_call.1} parent=1 // pred_check
      _
    $region19: #{tpu_custom_call.1} parent=1 // pred_check_branch
      %89 = sbr.rel (0) target = $region21
    $region20: #{tpu_custom_call.1} parent=1 // pred_region
      %s91 = ssub.s32 256, 256
      %92 = vsyncadd [#allocation4], %s91
      %s93 = sshll.u32 [#allocation5], 4
      %s94 = int_to_ptr.vmem [resolvable:$true] %s93
      %99 = dma.vmem_to_hbm [thread:$0]  %s94, 256, %s3, [#allocation4], 128, 128, 8
    $region21: #{tpu_custom_call.1} parent=1 // pred_fallthru
      _
    // Predicated region
    $region22: #{tpu_custom_call.1} parent=1 // pred_check
      _
    $region23: #{tpu_custom_call.1} parent=1 // pred_check_branch
      %101 = sbr.rel (0) target = $region25
    $region24: #{tpu_custom_call.1} parent=1 // pred_region
      %102 = dma.done [#allocation4], 256
    $region25: #{tpu_custom_call.1} parent=1 // pred_fallthru
      _
    %103 = vsyncpa [#allocation3], 1
    %104 = vsyncpa [#allocation4], 1

</llo_original>
